<compile_context>
chip_gen: v5e
topology: v5e:2x2
jax: 0.10.0
libtpu: 0.0.40
codegen_flags: <defaults>
</compile_context>

<pallas_src>
import jax
import jax.numpy as jnp
from jax.experimental import pallas as pl
from jax.experimental.pallas import tpu as pltpu


def _round_up(x, m):
    return ((x + m - 1) // m) * m


def _cdiv(a, b):
    return -(-a // b)


def _physical_vmem_bytes():
    try:
        info = pltpu.get_tpu_info()
        vmem = getattr(info, "vmem_capacity_bytes", None)
        if vmem:
            return int(vmem)
    except Exception:
        pass
    try:
        kind = jax.devices()[0].device_kind.lower()
        if "v7" in kind:
            return 64 * 1024 * 1024
    except Exception:
        pass
    return 128 * 1024 * 1024


def _vmem_budget_bytes():
    phys = _physical_vmem_bytes()
    if phys <= 64 * 1024 * 1024:      # v7x: 64 MiB per TensorCore
        return 44 * 1024 * 1024
    return 96 * 1024 * 1024           # v5e / v6e: 128 MiB physical


def _step_vmem_bytes(tile_n, tile_k, m_pad, itemsize):
    """Rough per-step VMEM footprint estimate for tile selection."""
    feat = 2 * tile_n * tile_k * itemsize      # double-buffered feature tiles
    protos = 2 * m_pad * tile_k * itemsize     # (default) double-buffered protos
    labels = 2 * tile_n * 4
    bias = 2 * m_pad * 4
    acc = tile_n * m_pad * 4                   # VMEM accumulator scratch
    inter = 2 * tile_n * m_pad * 4             # softmax intermediates headroom
    out = 2 * 8 * 128 * 4
    return feat + protos + labels + bias + acc + inter + out


def _dce_loss_kernel(feat_ref, label_ref, proto_ref, bias_ref, out_ref, acc_ref):
    k = pl.program_id(1)

    @pl.when(k == 0)
    def _():
        acc_ref[...] = jnp.zeros_like(acc_ref)

    # One MXU matmul per (row-tile, K-chunk); f32 accumulation in VMEM scratch.
    x = feat_ref[...]            # (tile_n, tile_k)  native dtype (bf16 / f32)
    p = proto_ref[...]           # (m_pad, tile_k)   native dtype, pre-scaled by 2
    acc_ref[...] += jnp.einsum("nd,md->nm", x, p,
                               preferred_element_type=jnp.float32)

    @pl.when(k == pl.num_programs(1) - 1)
    def _():
        class_ids = label_ref[...]                    # (tile_n, 1) int32, -1 = pad row
        bias = bias_ref[...]                          # (1, m_pad) f32, -1e30 on pad cols
        logits = acc_ref[...] + bias                  # = 2 x.p - ||p||^2 (+ pad mask)

        m = jnp.max(logits, axis=1, keepdims=True)
        lse = m + jnp.log(jnp.sum(jnp.exp(logits - m), axis=1, keepdims=True))

        tn, mp = logits.shape
        col_ids = jax.lax.broadcasted_iota(jnp.int32, (tn, mp), 1)
        picked = jnp.sum(jnp.where(col_ids == class_ids, logits, 0.0),
                         axis=1, keepdims=True)       # target logit per real row
        per_row = jnp.where(class_ids >= 0, picked - lse, 0.0)   # (tile_n, 1)
        total = jnp.sum(per_row, axis=0, keepdims=True)          # (1, 1)

        # Lane-dense, fully aligned (1, 8, 128) partial-sum block; wrapper reads
        # element [:, 0, 0] of each tile.
        out_ref[...] = jnp.broadcast_to(total.reshape(1, 1, 1), out_ref.shape)


def dce_loss(features, labels, prototypes, n_query, n_classes, gamma=0.05):
    """JAX/Pallas equivalent of DCELoss.forward. Returns a scalar f32 loss."""
    del gamma  # stored by the PyTorch module but unused in forward

    n, d = features.shape
    m, d2 = prototypes.shape
    assert d == d2
    assert n == n_query * n_classes
    assert m == n_classes

    # torch.unique(labels) is sorted; the per-label concatenation assigns each
    # row the rank of its label.  searchsorted reproduces that rank without the
    # O(N log N) sort + full (N, D) gather of the feature matrix.
    # (Assumes exactly n_classes distinct labels are present, as the module does.)
    uniq = jnp.unique(labels, size=n_classes)
    class_ids = jnp.searchsorted(uniq, labels).astype(jnp.int32)

    itemsize = jnp.dtype(features.dtype).itemsize
    budget = _vmem_budget_bytes()

    # ---- Feature-dim padding / K tiling (generation-aware). -----------------
    m_pad = _round_up(m, 128)
    if d < 128:
        d_pad = d                        # full-extent last dim; don't inflate DMA
    else:
        d_pad = _round_up(d, 128)        # lane-dense, unmasked vld

    if d_pad < 128 or _step_vmem_bytes(512, d_pad, m_pad, itemsize) <= budget:
        tile_k = d_pad                   # single K step; protos stay resident
    else:
        # Split D into ~1024-column chunks accumulated into the VMEM scratch so
        # large D still fits v7x's 64 MiB while keeping tile_n large.
        num_k = _cdiv(d_pad, 1024)
        tile_k = _round_up(_cdiv(d_pad, num_k), 128)
        d_pad = num_k * tile_k
    num_k = d_pad // tile_k

    # ---- Row tiling: biggest tile that fits the per-generation VMEM budget. -
    tile_n = 8
    for cand in (8192, 4096, 2048, 1024, 512, 256, 128, 64, 32, 16, 8):
        if _step_vmem_bytes(cand, tile_k, m_pad, itemsize) <= budget:
            tile_n = cand
            break
    tile_n = min(tile_n, _round_up(n, 8))

    num_tiles = _cdiv(n, tile_n)
    if num_tiles % 2 == 1 and n > 8:
        # v7x shards the "parallel" axis across 2 TensorCores; an odd tile count
        # leaves one core idle/imbalanced.  Harmless on single-core v5e/v6e.
        target_tiles = num_tiles + 1
        tile_n = max(8, _round_up(_cdiv(n, target_tiles), 8))
        num_tiles = _cdiv(n, tile_n)
    n_pad = num_tiles * tile_n

    # ---- Padded operands. ----------------------------------------------------
    # Prototypes: pre-scaled by 2 (exact) so the kernel computes x @ (2p)^T;
    # bias uses the UNscaled prototypes: -||p||^2, -1e30 on class-lane padding.
    proto_p = jnp.zeros((m_pad, d_pad), dtype=prototypes.dtype)
    proto_p = proto_p.at[:m, :d].set(prototypes)
    p2 = jnp.sum(proto_p.astype(jnp.float32) ** 2, axis=1)            # (m_pad,)
    bias = jnp.where(jnp.arange(m_pad) < m, -p2, -1e30)
    bias = bias.astype(jnp.float32).reshape(1, m_pad)
    proto_scaled = (proto_p * 2).astype(prototypes.dtype)

    # Rows padded to the tile; padded rows carry label -1 (matches no column and
    # is masked out of per_row) so they contribute exactly 0.
    feats_p = jnp.zeros((n_pad, d_pad), dtype=features.dtype).at[:n, :d].set(features)
    labels_p = jnp.full((n_pad, 1), -1, dtype=jnp.int32).at[:n, 0].set(class_ids)

    out = pl.pallas_call(
        _dce_loss_kernel,
        out_shape=jax.ShapeDtypeStruct((num_tiles, 8, 128), jnp.float32),
        grid=(num_tiles, num_k),
        in_specs=[
            pl.BlockSpec((tile_n, tile_k), lambda i, k: (i, k)),
            pl.BlockSpec((tile_n, 1), lambda i, k: (i, 0)),
            pl.BlockSpec((m_pad, tile_k), lambda i, k: (0, k)),
            pl.BlockSpec((1, m_pad), lambda i, k: (0, 0)),
        ],
        out_specs=pl.BlockSpec((1, 8, 128), lambda i, k: (i, 0, 0)),
        scratch_shapes=[pltpu.VMEM((tile_n, m_pad), jnp.float32)],
        compiler_params=pltpu.CompilerParams(
            dimension_semantics=("parallel", "arbitrary"),
            vmem_limit_bytes=budget,
        ),
        cost_estimate=pl.CostEstimate(
            flops=2 * n_pad * m_pad * d_pad,
            transcendentals=n_pad * m_pad,
            bytes_accessed=n_pad * d_pad * itemsize                     # features
            + (num_tiles if num_k > 1 else 1) * m_pad * d_pad * itemsize  # protos
            + n_pad * 4 + m_pad * 4                                     # labels + bias
            + num_tiles * 8 * 128 * 4,                                  # partial sums
        ),
    )(feats_p, labels_p, proto_scaled, bias)

    partial_sums = out[:, 0, 0]                                         # (num_tiles,)
    return -jnp.sum(partial_sums) / jnp.float32(n)


def _reference_dce_loss(features, labels, prototypes, n_query, n_classes):
    """Pure-JAX mirror of the PyTorch module (sort-by-label + i // n_query)."""
    order = jnp.argsort(labels)                # stable
    x = features[order].astype(jnp.float32)
    p = prototypes.astype(jnp.float32)
    diff = x[:, None, :] - p[None, :, :]
    dists = jnp.sum(diff * diff, axis=2)
    log_p_y = jax.nn.log_softmax(-dists, axis=1).reshape(n_classes, n_query, -1)
    tgt = jnp.arange(n_classes).reshape(n_classes, 1, 1)
    tgt = jnp.broadcast_to(tgt, (n_classes, n_query, 1))
    gathered = jnp.take_along_axis(log_p_y, tgt, axis=2)
    return -jnp.mean(gathered)


if __name__ == "__main__":
    n_classes = 4
    n_query = 8
    d = 32
    n = n_classes * n_query

    key = jax.random.PRNGKey(0)
    k_feat, k_proto, k_perm = jax.random.split(key, 3)

    features = jax.random.normal(k_feat, (n, d), dtype=jnp.float32)
    prototypes = jax.random.normal(k_proto, (n_classes, d), dtype=jnp.float32)
    # Labels: n_query examples per class, in shuffled order; row i of
    # `features` carries label `labels[i]`.
    labels = jnp.repeat(jnp.arange(n_classes, dtype=jnp.int32), n_query)
    labels = jax.random.permutation(k_perm, labels)

    loss = dce_loss(features, labels, prototypes, n_query, n_classes)
    loss = jax.block_until_ready(loss)

    ref = _reference_dce_loss(features, labels, prototypes, n_query, n_classes)
    assert jnp.allclose(loss, ref, atol=1e-4, rtol=1e-4), (loss, ref)

    print("KERNEL_OK")
</pallas_src>

<mosaic_0001>
module attributes {stable_mosaic.version = 11 : i64} {
  func.func @_dce_loss_kernel(%arg0: i32, %arg1: i32, %arg2: memref<16x32xf32, #tpu.memory_space<vmem>>, %arg3: memref<16x1xi32, #tpu.memory_space<vmem>>, %arg4: memref<128x32xf32, #tpu.memory_space<vmem>>, %arg5: memref<1x128xf32, #tpu.memory_space<vmem>>, %arg6: memref<1x8x128xf32, #tpu.memory_space<vmem>>, %arg7: memref<16x128xf32, #tpu.memory_space<vmem>>) attributes {dimension_semantics = [#tpu.dimension_semantics<parallel>, #tpu.dimension_semantics<arbitrary>], iteration_bounds = array<i64: 2, 1>, scalar_prefetch = 0 : i64, scratch_operands = 1 : i64, tpu.core_type = #tpu.core_type<tc>, window_params = [{transform_indices = @transform_0, window_bounds = array<i64: 16, 32>}, {transform_indices = @transform_1, window_bounds = array<i64: 16, 1>}, {transform_indices = @transform_2, window_bounds = array<i64: 128, 32>}, {pipeline_mode = #tpu.pipeline_mode<synchronous>, transform_indices = @transform_3, window_bounds = array<i64: 1, 128>}, {transform_indices = @transform_4, window_bounds = array<i64: 1, 8, 128>}]} {
    %c0_i32 = arith.constant 0 : i32
    %0 = arith.cmpi eq, %arg1, %c0_i32 : i32
    %1 = arith.extui %0 : i1 to i32
    %c0_i32_0 = arith.constant 0 : i32
    %2 = arith.cmpi ne, %1, %c0_i32_0 : i32
    scf.if %2 {
      %cst_10 = arith.constant 0.000000e+00 : f32
      %12 = vector.broadcast %cst_10 : f32 to vector<16x128xf32>
      %c0_11 = arith.constant 0 : index
      %c0_12 = arith.constant 0 : index
      %13 = vector.load %arg7[%c0_11, %c0_12] : memref<16x128xf32, #tpu.memory_space<vmem>>, vector<16x128xf32>
      tpu.vector_store %arg7[%c0_11, %c0_12], %12 {strides = array<i32>} : memref<16x128xf32, #tpu.memory_space<vmem>>, vector<16x128xf32>,
    } else {
    }
    %c0 = arith.constant 0 : index
    %c0_1 = arith.constant 0 : index
    %3 = vector.load %arg2[%c0, %c0_1] : memref<16x32xf32, #tpu.memory_space<vmem>>, vector<16x32xf32>
    %c0_2 = arith.constant 0 : index
    %c0_3 = arith.constant 0 : index
    %4 = vector.load %arg4[%c0_2, %c0_3] : memref<128x32xf32, #tpu.memory_space<vmem>>, vector<128x32xf32>
    %c0_4 = arith.constant 0 : index
    %c0_5 = arith.constant 0 : index
    %5 = vector.load %arg7[%c0_4, %c0_5] : memref<16x128xf32, #tpu.memory_space<vmem>>, vector<16x128xf32>
    "tpu.trace_start"() <{level = 10 : i32, message = "nd,md->nm"}> : () -> ()
    %cst = arith.constant dense<0.000000e+00> : vector<16x128xf32>
    %6 = tpu.matmul %3, %4, %cst {dimension_numbers = #tpu.dot_dimension_numbers<[1], [1], [0], [0], [0, 0, 1, 0], [], []>} : vector<16x32xf32>, vector<128x32xf32>, vector<16x128xf32> -> vector<16x128xf32>
    "tpu.trace_stop"() : () -> ()
    %7 = arith.addf %5, %6 : vector<16x128xf32>
    %c0_6 = arith.constant 0 : index
    %c0_7 = arith.constant 0 : index
    %8 = vector.load %arg7[%c0_6, %c0_7] : memref<16x128xf32, #tpu.memory_space<vmem>>, vector<16x128xf32>
    tpu.vector_store %arg7[%c0_6, %c0_7], %7 {strides = array<i32>} : memref<16x128xf32, #tpu.memory_space<vmem>>, vector<16x128xf32>,
    %c0_i32_8 = arith.constant 0 : i32
    %9 = arith.cmpi eq, %arg1, %c0_i32_8 : i32
    %10 = arith.extui %9 : i1 to i32
    %c0_i32_9 = arith.constant 0 : i32
    %11 = arith.cmpi ne, %10, %c0_i32_9 : i32
    scf.if %11 {
      %c0_10 = arith.constant 0 : index
      %c0_11 = arith.constant 0 : index
      %12 = vector.load %arg3[%c0_10, %c0_11] : memref<16x1xi32, #tpu.memory_space<vmem>>, vector<16x1xi32>
      %c0_12 = arith.constant 0 : index
      %c0_13 = arith.constant 0 : index
      %13 = vector.load %arg5[%c0_12, %c0_13] : memref<1x128xf32, #tpu.memory_space<vmem>>, vector<1x128xf32>
      %c0_14 = arith.constant 0 : index
      %c0_15 = arith.constant 0 : index
      %14 = vector.load %arg7[%c0_14, %c0_15] : memref<16x128xf32, #tpu.memory_space<vmem>>, vector<16x128xf32>
      %15 = vector.broadcast %13 : vector<1x128xf32> to vector<16x128xf32>
      %16 = arith.addf %14, %15 : vector<16x128xf32>
      %cst_16 = arith.constant dense<0xFF800000> : vector<16xf32>
      %17 = vector.multi_reduction <maximumf>, %16, %cst_16 [1] : vector<16x128xf32> to vector<16xf32>
      %18 = vector.shape_cast %17 : vector<16xf32> to vector<16x1xf32>
      %19 = vector.broadcast %18 : vector<16x1xf32> to vector<16x128xf32>
      %20 = arith.subf %16, %19 : vector<16x128xf32>
      %21 = math.exp %20 : vector<16x128xf32>
      %cst_17 = arith.constant dense<0.000000e+00> : vector<16xf32>
      %22 = vector.multi_reduction <add>, %21, %cst_17 [1] : vector<16x128xf32> to vector<16xf32>
      %23 = vector.shape_cast %22 : vector<16xf32> to vector<16x1xf32>
      %24 = math.log %23 : vector<16x1xf32>
      %25 = arith.addf %18, %24 : vector<16x1xf32>
      %26 = tpu.iota {dimensions = array<i32: 1>} : vector<16x128xi32>
      %27 = vector.broadcast %12 : vector<16x1xi32> to vector<16x128xi32>
      %28 = arith.cmpi eq, %26, %27 : vector<16x128xi32>
      %cst_18 = arith.constant 0.000000e+00 : f32
      %29 = vector.broadcast %cst_18 : f32 to vector<16x128xf32>
      %30 = arith.select %28, %16, %29 : vector<16x128xi1>, vector<16x128xf32>
      %cst_19 = arith.constant dense<0.000000e+00> : vector<16xf32>
      %31 = vector.multi_reduction <add>, %30, %cst_19 [1] : vector<16x128xf32> to vector<16xf32>
      %32 = vector.shape_cast %31 : vector<16xf32> to vector<16x1xf32>
      %c0_i32_20 = arith.constant 0 : i32
      %33 = vector.broadcast %c0_i32_20 : i32 to vector<16x1xi32>
      %34 = arith.cmpi sge, %12, %33 : vector<16x1xi32>
      %35 = arith.subf %32, %25 : vector<16x1xf32>
      %cst_21 = arith.constant 0.000000e+00 : f32
      %36 = vector.broadcast %cst_21 : f32 to vector<16x1xf32>
      %37 = arith.select %34, %35, %36 : vector<16x1xi1>, vector<16x1xf32>
      %cst_22 = arith.constant dense<0.000000e+00> : vector<1xf32>
      %38 = vector.multi_reduction <add>, %37, %cst_22 [0] : vector<16x1xf32> to vector<1xf32>
      %39 = vector.shape_cast %38 : vector<1xf32> to vector<1x1xf32>
      %40 = vector.shape_cast %39 : vector<1x1xf32> to vector<1x1x1xf32>
      %41 = vector.shape_cast %40 : vector<1x1x1xf32> to vector<1x1x1xf32>
      %42 = vector.broadcast %41 : vector<1x1x1xf32> to vector<1x8x128xf32>
      %c0_23 = arith.constant 0 : index
      %c0_24 = arith.constant 0 : index
      %c0_25 = arith.constant 0 : index
      %43 = vector.load %arg6[%c0_23, %c0_24, %c0_25] : memref<1x8x128xf32, #tpu.memory_space<vmem>>, vector<1x8x128xf32>
      tpu.vector_store %arg6[%c0_23, %c0_24, %c0_25], %42 {strides = array<i32>} : memref<1x8x128xf32, #tpu.memory_space<vmem>>, vector<1x8x128xf32>,
    } else {
    }
    return
  }
  func.func @transform_0(%arg0: i32, %arg1: i32) -> (i32, i32) {
    %c0_i32 = arith.constant 0 : i32
    return %arg0, %arg1 : i32, i32
  }
  func.func @transform_1(%arg0: i32, %arg1: i32) -> (i32, i32) {
    %c0_i32 = arith.constant 0 : i32
    %c0_i32_0 = arith.constant 0 : i32
    return %arg0, %c0_i32 : i32, i32
  }
  func.func @transform_2(%arg0: i32, %arg1: i32) -> (i32, i32) {
    %c0_i32 = arith.constant 0 : i32
    %c0_i32_0 = arith.constant 0 : i32
    return %c0_i32, %arg1 : i32, i32
  }
  func.func @transform_3(%arg0: i32, %arg1: i32) -> (i32, i32) {
    %c0_i32 = arith.constant 0 : i32
    %c0_i32_0 = arith.constant 0 : i32
    %c0_i32_1 = arith.constant 0 : i32
    return %c0_i32, %c0_i32_0 : i32, i32
  }
  func.func @transform_4(%arg0: i32, %arg1: i32) -> (i32, i32, i32) {
    %c0_i32 = arith.constant 0 : i32
    %c0_i32_0 = arith.constant 0 : i32
    %c0_i32_1 = arith.constant 0 : i32
    return %arg0, %c0_i32, %c0_i32_0 : i32, i32, i32
  }
}

</mosaic_0001>

<llo_original>
// kernel: tpu_custom_call.1
$region0: #{tpu_custom_call.1}
  #allocation0 [shape = 'u32[]', space=smem, size = 0x4, offset = 0x4, fixed_abs, tag = 'smem constant byte address 0x4 - core index']
  #allocation1 [shape = 'u32[72,128]{1,0:T(1,128)}', space=vmem, size = 0x9000, scoped, tag = 'internal scratch']
  #allocation2 [shape = 'f32[16,128]{1,0:T(8,128)}', space=vmem, size = 0x2000, scoped, tag = 'scratch operand']
  %s0 = inlined_call_operand.vmem [shape: f32[32,32], index: 0, kind: input, shape index: {}]
  %s1 = inlined_call_operand.vmem [shape: s32[32,1], index: 1, kind: input, shape index: {}]
  %s2 = inlined_call_operand.vmem [shape: f32[128,32], index: 2, kind: input, shape index: {}]
  %s3 = inlined_call_operand.vmem [shape: f32[1,128], index: 3, kind: input, shape index: {}]
  %s4 = inlined_call_operand.hbm [shape: f32[2,8,128], index: 4, kind: output, shape index: {}]
  %s5 = sld [smem:[#allocation0]]
  $region57: #{tpu_custom_call.1} parent=0
    _
  %s7 = ssub.s32 1, %s5
  %s8 = scalar_select 0, %s7, %s5
  $region1: #{tpu_custom_call.1} parent=0
    #allocation3 [shape = 'u8[8192]{0}', space=vmem, size = 0x2000, scoped, tag = 'output window, operand 0']
    #allocation4 [shape = 's32[2]{0}', space=sflag, size = 0x8, scoped, tag = 'scoped memory for tpu_custom_call.1']
    %9 = vsyncpa [#allocation4], 0
    %s10 = scalar_lea.sflag [#allocation4], 1
    %11 = vsyncpa %s10, 0
    loop: start=0, step=1, limit=4
    $region2: #{tpu_custom_call.1} parent=1 // loop_pre_header
      _
    $region3: #{tpu_custom_call.1} parent=1 // loop_header
      %s13 = sphi 0, %s17
      %p14 = scmp.ge.s32.totalorder %s13, 4
      %s20 = sphi 0, %s32
      %s21 = sphi 0, %s28
      %s22 = sphi 0, %s20
      %s23 = sphi 0, %s21
      %s24 = sphi 0, %s22
      %s25 = sphi 0, %s23
      %s37 = sphi 0, %s39
      %s40 = sphi 0, %s37
      %s41 = sphi 0, %s40
      %s57 = sphi 0, %s41
      %s63 = sphi 0, %s65
      %s66 = sphi 0, %s63
      %s67 = sphi 0, %s66
      %s83 = sphi 0, %s67
      %s89 = sphi 0, %s91
      %s92 = sphi 0, %s89
      %s93 = sphi 0, %s92
      %s109 = sphi 0, %s93
      %s113 = sphi 0, %s113
      %s115 = sphi 0, %s113
      %s116 = sphi 0, %s115
      %s130 = sphi 0, %s116
      %s136 = sphi 0, %s138
      %s139 = sphi 0, %s136
      %s140 = sphi 0, %s139
      %s156 = sphi 0, %s140
    $region4: #{tpu_custom_call.1} parent=1 // loop_header_branch
      %16 = sbr.rel (%p14) target = $region8
    $region5: #{tpu_custom_call.1} parent=1 // loop_body
      %s18 = ssub.s32 %s13, 1
      %s19 = ssub.s32 %s13, 2
      %s26 = sadd.s32 1, %s21
      %p27 = scmp.ge.s32.totalorder %s26, 1
      %s28 = scalar_select %p27, 0, %s26
      %s29 = sadd.s32 1, %s20
      %s30 = scalar_select %p27, %s29, %s20
      %p31 = scmp.ge.s32.totalorder %s30, 2
      %s32 = scalar_select %p31, 0, %s30
      %s33 = ssub.s32 %s20, %s32
      %s34 = ssub.s32 %s21, %s28
      %s35 = sor.u32 %s33, %s34
      %p36 = scmp.eq.s32.totalorder %s35, 0
      %s38 = sadd.s32 %s37, 1
      %s39 = scalar_select %p36, %s37, %s38
      %p42 = pneg %p36
      %p43 = scmp.eq.s32.totalorder %s13, 1
      %p44 = por %p42, %p43
      %p45 = scmp.ne.s32.totalorder %s37, %s40
      %p46 = scmp.eq.s32.totalorder %s13, 0
      %p47 = por %p45, %p46
      %p48 = scmp.ne.s32.totalorder %s37, %s40
      %p49 = scmp.eq.s32.totalorder %s18, 1
      %p50 = por %p48, %p49
      %p51 = scmp.ne.s32.totalorder %s40, %s41
      %p52 = scmp.eq.s32.totalorder %s18, 0
      %p53 = por %p51, %p52
      %p54 = scmp.ne.s32.totalorder %s40, %s41
      %p55 = scmp.eq.s32.totalorder %s19, 1
      %p56 = por %p54, %p55
      %p58 = scmp.ne.s32.totalorder %s41, %s57
      %p59 = scmp.eq.s32.totalorder %s19, 0
      %p60 = por %p58, %p59
      %s61 = ssub.s32 %s20, %s32
      %p62 = scmp.eq.s32.totalorder %s61, 0
      %s64 = sadd.s32 %s63, 1
      %s65 = scalar_select %p62, %s63, %s64
      %p68 = pneg %p62
      %p69 = scmp.eq.s32.totalorder %s13, 1
      %p70 = por %p68, %p69
      %p71 = scmp.ne.s32.totalorder %s63, %s66
      %p72 = scmp.eq.s32.totalorder %s13, 0
      %p73 = por %p71, %p72
      %p74 = scmp.ne.s32.totalorder %s63, %s66
      %p75 = scmp.eq.s32.totalorder %s18, 1
      %p76 = por %p74, %p75
      %p77 = scmp.ne.s32.totalorder %s66, %s67
      %p78 = scmp.eq.s32.totalorder %s18, 0
      %p79 = por %p77, %p78
      %p80 = scmp.ne.s32.totalorder %s66, %s67
      %p81 = scmp.eq.s32.totalorder %s19, 1
      %p82 = por %p80, %p81
      %p84 = scmp.ne.s32.totalorder %s67, %s83
      %p85 = scmp.eq.s32.totalorder %s19, 0
      %p86 = por %p84, %p85
      %s87 = ssub.s32 %s21, %s28
      %p88 = scmp.eq.s32.totalorder %s87, 0
      %s90 = sadd.s32 %s89, 1
      %s91 = scalar_select %p88, %s89, %s90
      %p94 = pneg %p88
      %p95 = scmp.eq.s32.totalorder %s13, 1
      %p96 = por %p94, %p95
      %p97 = scmp.ne.s32.totalorder %s89, %s92
      %p98 = scmp.eq.s32.totalorder %s13, 0
      %p99 = por %p97, %p98
      %p100 = scmp.ne.s32.totalorder %s89, %s92
      %p101 = scmp.eq.s32.totalorder %s18, 1
      %p102 = por %p100, %p101
      %p103 = scmp.ne.s32.totalorder %s92, %s93
      %p104 = scmp.eq.s32.totalorder %s18, 0
      %p105 = por %p103, %p104
      %p106 = scmp.ne.s32.totalorder %s92, %s93
      %p107 = scmp.eq.s32.totalorder %s19, 1
      %p108 = por %p106, %p107
      %p110 = scmp.ne.s32.totalorder %s93, %s109
      %p111 = scmp.eq.s32.totalorder %s19, 0
      %p112 = por %p110, %p111
      %s114 = sadd.s32 %s113, 1
      %p117 = scmp.eq.s32.totalorder %s13, 1
      %p118 = scmp.ne.s32.totalorder %s113, %s115
      %p119 = scmp.eq.s32.totalorder %s13, 0
      %p120 = por %p118, %p119
      %p121 = scmp.ne.s32.totalorder %s113, %s115
      %p122 = scmp.eq.s32.totalorder %s18, 1
      %p123 = por %p121, %p122
      %p124 = scmp.ne.s32.totalorder %s115, %s116
      %p125 = scmp.eq.s32.totalorder %s18, 0
      %p126 = por %p124, %p125
      %p127 = scmp.ne.s32.totalorder %s115, %s116
      %p128 = scmp.eq.s32.totalorder %s19, 1
      %p129 = por %p127, %p128
      %p131 = scmp.ne.s32.totalorder %s116, %s130
      %p132 = scmp.eq.s32.totalorder %s19, 0
      %p133 = por %p131, %p132
      %s134 = ssub.s32 %s20, %s32
      %p135 = scmp.eq.s32.totalorder %s134, 0
      %s137 = sadd.s32 %s136, 1
      %s138 = scalar_select %p135, %s136, %s137
      %p141 = pneg %p135
      %p142 = scmp.eq.s32.totalorder %s13, 1
      %p143 = por %p141, %p142
      %p144 = scmp.ne.s32.totalorder %s136, %s139
      %p145 = scmp.eq.s32.totalorder %s13, 0
      %p146 = por %p144, %p145
      %p147 = scmp.ne.s32.totalorder %s136, %s139
      %p148 = scmp.eq.s32.totalorder %s18, 1
      %p149 = por %p147, %p148
      %p150 = scmp.ne.s32.totalorder %s139, %s140
      %p151 = scmp.eq.s32.totalorder %s18, 0
      %p152 = por %p150, %p151
      %p153 = scmp.ne.s32.totalorder %s139, %s140
      %p154 = scmp.eq.s32.totalorder %s19, 1
      %p155 = por %p153, %p154
      %p157 = scmp.ne.s32.totalorder %s140, %s156
      %p158 = scmp.eq.s32.totalorder %s19, 0
      %p159 = por %p157, %p158
      %p160 = scmp.le.s32.totalorder 1, %s13
      %p161 = scmp.lt.s32.totalorder %s13, 3
      %p162 = pnand %p160, %p161
      %p163 = pneg %p162
      // Predicated region
      $region9: #{tpu_custom_call.1} parent=5 // pred_check
        _
      $region10: #{tpu_custom_call.1} parent=5 // pred_check_branch
        %165 = sbr.rel (%p162) target = $region12
      $region11: #{tpu_custom_call.1} parent=5 // pred_region
        %s166 = ssub.s32 %s13, 1
        // Predicated region
        $region13: #{tpu_custom_call.1} parent=11 // pred_check
          %p167 = pneg %p105
        $region14: #{tpu_custom_call.1} parent=11 // pred_check_branch
          %169 = sbr.rel (%p167) target = $region16
        $region15: #{tpu_custom_call.1} parent=11 // pred_region
          %p170 = scmp.lt.s32.totalorder %s23, 0
          %s171 = scalar_select %p170, %s23, 0
          %s172 = smul.addr %s171, 8
          %s173 = scalar_lea.vmem %s2, %s172
        $region16: #{tpu_custom_call.1} parent=11 // pred_fallthru
          _
        // Predicated region
        $region17: #{tpu_custom_call.1} parent=11 // pred_check
          %p174 = pneg %p126
        $region18: #{tpu_custom_call.1} parent=11 // pred_check_branch
          %176 = sbr.rel (%p174) target = $region20
        $region19: #{tpu_custom_call.1} parent=11 // pred_region
          _
        $region20: #{tpu_custom_call.1} parent=11 // pred_fallthru
          _
      $region12: #{tpu_custom_call.1} parent=5 // pred_fallthru
        _
      %p177 = scmp.lt.s32.totalorder %s13, 2
      // Predicated region
      $region21: #{tpu_custom_call.1} parent=5 // pred_check
        %p178 = pneg %p177
      $region22: #{tpu_custom_call.1} parent=5 // pred_check_branch
        %180 = sbr.rel (%p178) target = $region24
      $region23: #{tpu_custom_call.1} parent=5 // pred_region
        // Predicated region
        $region25: #{tpu_custom_call.1} parent=23 // pred_check
          %p181 = pneg %p47
        $region26: #{tpu_custom_call.1} parent=23 // pred_check_branch
          %183 = sbr.rel (%p181) target = $region28
        $region27: #{tpu_custom_call.1} parent=23 // pred_region
          %s184 = smul.u32 2, %s20
          %p185 = scmp.lt.s32.totalorder %s184, 3
          %s186 = scalar_select %p185, %s184, 3
          %p187 = scmp.lt.s32.totalorder %s21, 0
          %s188 = scalar_select %p187, %s21, 0
          %s189 = sadd.s32 %s188, %s186
          %s190 = smul.addr %s189, 8
          %s191 = scalar_lea.vmem %s0, %s190
          %s192 = smul.u32 2, %s20
        $region28: #{tpu_custom_call.1} parent=23 // pred_fallthru
          _
        // Predicated region
        $region29: #{tpu_custom_call.1} parent=23 // pred_check
          %p193 = pneg %p73
        $region30: #{tpu_custom_call.1} parent=23 // pred_check_branch
          %195 = sbr.rel (%p193) target = $region32
        $region31: #{tpu_custom_call.1} parent=23 // pred_region
          %s196 = smul.u32 2, %s20
          %p197 = scmp.lt.s32.totalorder %s196, 3
          %s198 = scalar_select %p197, %s196, 3
          %s199 = smul.addr %s198, 8
          %s200 = scalar_lea.vmem %s1, %s199
          %s201 = smul.u32 2, %s20
        $region32: #{tpu_custom_call.1} parent=23 // pred_fallthru
          _
      $region24: #{tpu_custom_call.1} parent=5 // pred_fallthru
        _
      %p202 = scmp.le.s32.totalorder 1, %s13
      %p203 = scmp.lt.s32.totalorder %s13, 3
      %p204 = pnand %p202, %p203
      %p205 = pneg %p204
      // Predicated region
      $region33: #{tpu_custom_call.1} parent=5 // pred_check
        _
      $region34: #{tpu_custom_call.1} parent=5 // pred_check_branch
        %207 = sbr.rel (%p204) target = $region36
      $region35: #{tpu_custom_call.1} parent=5 // pred_region
        %s208 = ssub.s32 %s13, 1
        %s209 = smul.u32 2, %s22
        %p210 = scmp.lt.s32.totalorder %s209, 3
        %s211 = scalar_select %p210, %s209, 3
        %p212 = scmp.lt.s32.totalorder %s23, 0
        %s213 = scalar_select %p212, %s23, 0
        %s214 = sadd.s32 %s213, %s211
        %s215 = smul.addr %s214, 8
        %s216 = scalar_lea.vmem %s0, %s215
        %p217 = pneg %p53
        %p218 = pneg %p50
        %s219 = smul.u32 2, %s22
        %p220 = scmp.lt.s32.totalorder %s219, 3
        %s221 = scalar_select %p220, %s219, 3
        %s222 = smul.addr %s221, 8
        %s223 = scalar_lea.vmem %s1, %s222
        %p224 = pneg %p79
        %p225 = pneg %p76
        %p226 = scmp.lt.s32.totalorder %s23, 0
        %s227 = scalar_select %p226, %s23, 0
        %s228 = smul.addr %s227, 8
        %s229 = scalar_lea.vmem %s2, %s228
        %p230 = pneg %p105
        %p231 = pneg %p102
        %p232 = pneg %p126
        %p233 = pneg %p123
        %p234 = pneg %p152
        %p235 = pneg %p149
        %s236 = sand.u32 %s139, 1
        %s237 = scalar_lea.sflag [#allocation4], %s236
        %s238 = sand.u32 %s139, 1
        %s239 = smul.addr %s238, 8
        %s240 = scalar_lea.vmem [#allocation3], %s239
        %s241 = smul.u32 2, %s22
        %p242 = scmp.lt.s32.totalorder %s241, 3
        %s243 = scalar_select %p242, %s241, 3
        %p244 = scmp.lt.s32.totalorder %s23, 0
        %s245 = scalar_select %p244, %s23, 0
        %s246 = sadd.s32 %s245, %s243
        %s247 = smul.addr %s246, 8
        %s248 = scalar_lea.vmem %s0, %s247
        %s249 = smul.u32 2, %s22
        %s250 = smul.u32 2, %s22
        %p251 = scmp.lt.s32.totalorder %s250, 3
        %s252 = scalar_select %p251, %s250, 3
        %s253 = smul.addr %s252, 8
        %s254 = scalar_lea.vmem %s1, %s253
        %s255 = smul.u32 2, %s22
        %p256 = scmp.lt.s32.totalorder %s23, 0
        %s257 = scalar_select %p256, %s23, 0
        %s258 = smul.addr %s257, 8
        %s259 = scalar_lea.vmem %s2, %s258
        %p260 = scmp.eq.s32.totalorder %s23, 0
        // Predicated region
        $region37: #{tpu_custom_call.1} parent=35 // pred_check
          %p261 = pneg %p260
        $region38: #{tpu_custom_call.1} parent=35 // pred_check_branch
          %263 = sbr.rel (%p261) target = $region40
        $region39: #{tpu_custom_call.1} parent=35 // pred_region
          %264 = vst [vmem:[#allocation2] sm:$0xff] 0.0
          %265 = vst [vmem:[#allocation2 + $0x8] sm:$0xff] 0.0
        $region40: #{tpu_custom_call.1} parent=35 // pred_fallthru
          _
        %v266 = vld [vmem:[%s248] sm:$0xff]
        %v267 = vld [vmem:[%s248 + $0x8] sm:$0xff]
        %v268 = vld [vmem:[%s259] sm:$0xff]
        %v269 = vld [vmem:[%s259 + $0x8] sm:$0xff]
        %v270 = vld [vmem:[%s259 + $0x10] sm:$0xff]
        %v271 = vld [vmem:[%s259 + $0x18] sm:$0xff]
        %v272 = vld [vmem:[%s259 + $0x20] sm:$0xff]
        %v273 = vld [vmem:[%s259 + $0x28] sm:$0xff]
        %v274 = vld [vmem:[%s259 + $0x30] sm:$0xff]
        %v275 = vld [vmem:[%s259 + $0x38] sm:$0xff]
        %v276 = vld [vmem:[%s259 + $0x40] sm:$0xff]
        %v277 = vld [vmem:[%s259 + $0x48] sm:$0xff]
        %v278 = vld [vmem:[%s259 + $0x50] sm:$0xff]
        %v279 = vld [vmem:[%s259 + $0x58] sm:$0xff]
        %v280 = vld [vmem:[%s259 + $0x60] sm:$0xff]
        %v281 = vld [vmem:[%s259 + $0x68] sm:$0xff]
        %v282 = vld [vmem:[%s259 + $0x70] sm:$0xff]
        %v283 = vld [vmem:[%s259 + $0x78] sm:$0xff]
        %v284 = vld [vmem:[#allocation2] sm:$0xff]
        %v285 = vld [vmem:[#allocation2 + $0x8] sm:$0xff]
        %vm286 = vcmask 261120
        %v288 = vsel %vm286, %v266, 0
        %v291 = vsel %vm286, %v267, 0
        %v294 = vsel %vm286, %v268, 0
        %v297 = vsel %vm286, %v269, 0
        %v300 = vsel %vm286, %v270, 0
        %v303 = vsel %vm286, %v271, 0
        %v306 = vsel %vm286, %v272, 0
        %v309 = vsel %vm286, %v273, 0
        %v312 = vsel %vm286, %v274, 0
        %v315 = vsel %vm286, %v275, 0
        %v318 = vsel %vm286, %v276, 0
        %v321 = vsel %vm286, %v277, 0
        %v324 = vsel %vm286, %v278, 0
        %v327 = vsel %vm286, %v279, 0
        %v330 = vsel %vm286, %v280, 0
        %v333 = vsel %vm286, %v281, 0
        %v336 = vsel %vm286, %v282, 0
        %v339 = vsel %vm286, %v283, 0
        %341 = vmatpush.xpose.msra.mxu0 %v339
        %342 = vmatpush.xpose.msra.mxu0 %v336
        %343 = vmatpush.xpose.msra.mxu0 %v333
        %344 = vmatpush.xpose.msra.mxu0 %v330
        %345 = vmatpush.xpose.msra.mxu0 %v327
        %346 = vmatpush.xpose.msra.mxu0 %v324
        %347 = vmatpush.xpose.msra.mxu0 %v321
        %348 = vmatpush.xpose.msra.mxu0 %v318
        %349 = vmatpush.xpose.msra.mxu0 %v315
        %350 = vmatpush.xpose.msra.mxu0 %v312
        %351 = vmatpush.xpose.msra.mxu0 %v309
        %352 = vmatpush.xpose.msra.mxu0 %v306
        %353 = vmatpush.xpose.msra.mxu0 %v303
        %354 = vmatpush.xpose.msra.mxu0 %v300
        %355 = vmatpush.xpose.msra.mxu0 %v297
        %356 = vmatpush.xpose.msra.mxu0 %v294
        %357 = vmatmul.f32.gmra.mxu0 %v288
        %v358 = vpop.f32.mrf.mxu0
        %v359 = vadd.f32 0.0, %v358
        %360 = vmatmul.f32.gmra.mxu0 %v291
        %v361 = vpop.f32.mrf.mxu0
        %v362 = vadd.f32 0.0, %v361
        %363 = vdwg.mxu0
        %v364 = vadd.f32 %v284, %v359
        %v365 = vadd.f32 %v285, %v362
        %366 = vst [vmem:[#allocation2] sm:$0xff] %v364
        %367 = vst [vmem:[#allocation2 + $0x8] sm:$0xff] %v365
        // Predicated region
        $region41: #{tpu_custom_call.1} parent=35 // pred_check
          %p368 = pneg %p260
        $region42: #{tpu_custom_call.1} parent=35 // pred_check_branch
          %370 = sbr.rel (%p368) target = $region44
        $region43: #{tpu_custom_call.1} parent=35 // pred_region
          %v371 = vld [vmem:[%s254] sm:$0xff]
          %v372 = vld [vmem:[%s254 + $0x8] sm:$0xff]
          %v373 = vld [vmem:[%s3] sm:$0x1]
          %v374 = vld [vmem:[#allocation2] sm:$0xff]
          %v375 = vld [vmem:[#allocation2 + $0x8] sm:$0xff]
          %v377 = vperm.slane %v373, 0
          %v379 = vadd.f32 %v374, %v377
          %v380 = vadd.f32 %v375, %v377
          %381 = vmax.xlane.f32.xlu0 %v379
          %v382 = vpop.xlane.xlu0 %381
          %383 = vmax.xlane.f32.xlu0 %v380
          %v384 = vpop.xlane.xlu0 %383
          %v385 = vsub.f32 %v379, %v382
          %v386 = vsub.f32 %v380, %v384
          %v387 = vmul.f32 %v385, 1.442695
          %v388 = vpow.pop %v387
          %v389 = vmul.f32 %v386, 1.442695
          %v390 = vpow.pop %v389
          %391 = vadd.xlane.f32.xlu0 %v388
          %v392 = vpop.xlane.xlu0 %391
          %393 = vadd.xlane.f32.xlu0 %v390
          %v394 = vpop.xlane.xlu0 %393
          %v395 = vlog2.pop %v392
          %v396 = vmul.f32 %v395, 0.6931472
          %v397 = vlog2.pop %v394
          %v398 = vmul.f32 %v397, 0.6931472
          %v399 = vadd.f32 %v382, %v396
          %v400 = vadd.f32 %v384, %v398
          %v401 = vlaneseq
          %v402 = vand.u32 %v401, 127
          %403 = vset.pattern.permute.xlu0 0
          %404 = vperm.xlu0 %403, %v371
          %v405 = vpop.permute.xlu0 %404
          %406 = vset.pattern.permute.xlu0 0
          %407 = vperm.xlu0 %406, %v372
          %v408 = vpop.permute.xlu0 %407
          %vm409 = vcmp.eq.s32.totalorder %v402, %v405
          %vm410 = vcmp.eq.s32.totalorder %v402, %v408
          %v411 = vsel %vm409, %v379, 0.0
          %v412 = vsel %vm410, %v380, 0.0
          %413 = vadd.xlane.f32.xlu0 %v411
          %v414 = vpop.xlane.xlu0 %413
          %415 = vadd.xlane.f32.xlu0 %v412
          %v416 = vpop.xlane.xlu0 %415
          %vm417 = vcmp.ge.s32.totalorder %v371, 0
          %vm418 = vcmp.ge.s32.totalorder %v372, 0
          %v419 = vsub.f32 %v414, %v399
          %v420 = vsub.f32 %v416, %v400
          %v421 = vsel %vm417, %v419, 0.0
          %v422 = vsel %vm418, %v420, 0.0
          %vm423 = vcmask 7168
          %v424 = vsel %vm423, %v421, 0.0
          %v425 = vsel %vm423, %v422, 0.0
          %v426 = vadd.f32 %v424, %v425
          %v427 = vrot.slane %v426, 4
          %v428 = vadd.f32 %v426, %v427
          %v429 = vrot.slane %v428, 2
          %v430 = vadd.f32 %v428, %v429
          %v431 = vrot.slane %v430, 1
          %v432 = vadd.f32 %v430, %v431
          %434 = vset.pattern.permute.xlu0 0
          %435 = vperm.xlu0 %434, %v432
          %v436 = vpop.permute.xlu0 %435
          %438 = vst [vmem:[%s240] sm:$0xff] %v436
        $region44: #{tpu_custom_call.1} parent=35 // pred_fallthru
          _
        %s439 = sand.u32 %s139, 1
        %s440 = scalar_lea.sflag [#allocation4], %s439
        %s441 = sand.u32 %s139, 1
        %s442 = smul.addr %s441, 8
        %s443 = scalar_lea.vmem [#allocation3], %s442
        // Predicated region
        $region45: #{tpu_custom_call.1} parent=35 // pred_check
          %p444 = pneg %p149
        $region46: #{tpu_custom_call.1} parent=35 // pred_check_branch
          %446 = sbr.rel (%p444) target = $region48
        $region47: #{tpu_custom_call.1} parent=35 // pred_region
          %448 = vsyncadd %s440, 0
          %s449 = smul.addr %s22, 8
          %s450 = scalar_lea.hbm %s4, %s449
          %s452 = sshll.u32 %s443, 4
          %s453 = int_to_ptr.vmem [resolvable:$true] %s452
          %s454 = sshll.u32 %s450, 4
          %s455 = int_to_ptr.hbm [resolvable:$true] %s454
          %457 = dma.vmem_to_hbm [thread:$0]  %s453, 128, %s455, %s440
        $region48: #{tpu_custom_call.1} parent=35 // pred_fallthru
          _
      $region36: #{tpu_custom_call.1} parent=5 // pred_fallthru
        _
      %p458 = scmp.le.s32.totalorder 2, %s13
      // Predicated region
      $region49: #{tpu_custom_call.1} parent=5 // pred_check
        %p459 = pneg %p458
      $region50: #{tpu_custom_call.1} parent=5 // pred_check_branch
        %461 = sbr.rel (%p459) target = $region52
      $region51: #{tpu_custom_call.1} parent=5 // pred_region
        %s462 = ssub.s32 %s13, 2
        // Predicated region
        $region53: #{tpu_custom_call.1} parent=51 // pred_check
          %p463 = pneg %p155
        $region54: #{tpu_custom_call.1} parent=51 // pred_check_branch
          %465 = sbr.rel (%p463) target = $region56
        $region55: #{tpu_custom_call.1} parent=51 // pred_region
          %s466 = sand.u32 %s140, 1
          %s467 = scalar_lea.sflag [#allocation4], %s466
          %s468 = sand.u32 %s140, 1
          %s469 = smul.addr %s468, 8
          %s470 = scalar_lea.vmem [#allocation3], %s469
          %472 = dma.done %s467, 128
        $region56: #{tpu_custom_call.1} parent=51 // pred_fallthru
          _
      $region52: #{tpu_custom_call.1} parent=5 // pred_fallthru
        _
    $region6: #{tpu_custom_call.1} parent=1 // loop_footer
      %s17 = sadd.s32 1, %s13
    $region7: #{tpu_custom_call.1} parent=1 // loop_footer_branch
      %12 = sbr.rel target = $region3
    $region8: #{tpu_custom_call.1} parent=1 // loop_exit
      _
    %473 = vsyncpa [#allocation4], 1
    %s474 = scalar_lea.sflag [#allocation4], 1
    %475 = vsyncpa %s474, 1

</llo_original>
